<compile_context>
chip_gen: v6e
topology: v6e:2x2x1
jax: 0.10.0
libtpu: 0.0.40
codegen_flags: <defaults>
</compile_context>

<pallas_src>
import functools
import math

import jax
import jax.numpy as jnp
from jax import lax
from jax.experimental import pallas as pl
from jax.experimental.pallas import tpu as pltpu

# MXU-native operand dtype for all matmuls (accumulation stays f32).
MATMUL_DTYPE = jnp.bfloat16


def _decoder_layer_kernel(
    x_ref,        # (T, E)   f32   T = L*N tokens, row t = (l = t//N, n = t%N)
    bias_ref,     # (T, T)   f32   additive attn bias: 0 same-batch, -1e30 cross-batch
    win_t_ref,    # (E, 3E)  bf16  in_proj_weight^T, Q-third pre-scaled by 1/sqrt(Dh)
    bin_ref,      # (1, 3E)  f32   in_proj_bias,     Q-third pre-scaled
    wout_t_ref,   # (E, E)   bf16  out_proj.weight^T
    bout_ref,     # (1, E)   f32
    w1_t_ref,     # (E, F)   bf16  ff linear1 weight^T
    b1_ref,       # (1, F)   f32
    w2_t_ref,     # (F, E)   bf16  ff linear2 weight^T
    b2_ref,       # (1, E)   f32
    g1_ref,       # (1, E)   norm1 gamma
    be1_ref,      # (1, E)   norm1 beta
    g2_ref,       # (1, E)   norm2 gamma
    be2_ref,      # (1, E)   norm2 beta
    o_ref,        # (T, E)   f32
    *,
    n_head: int,
):
    T, E = x_ref.shape
    H = n_head
    Dh = E // H

    xf = x_ref[...]                                   # (T, E) f32, single dense load
    bias = bias_ref[...]                              # (T, T) f32

    # ---- QKV projection (one matmul for all tokens & heads) ----------------
    qkv = jnp.dot(xf.astype(MATMUL_DTYPE), win_t_ref[...],
                  preferred_element_type=jnp.float32) + bin_ref[...]   # (T, 3E)

    # ---- attention: all batch elements at once, per head -------------------
    # Per head h: full (T, T) score matrix over every token row; cross-batch
    # pairs get -1e30 added before softmax so their probabilities underflow to
    # exactly 0 and the PV matmul reduces to per-batch attention.  Everything
    # stays 2-D (no sublane shuffles, no transposes, no lane-split reshapes).
    ctx_heads = []
    for h in range(H):
        q_h = qkv[:, h * Dh:(h + 1) * Dh].astype(MATMUL_DTYPE)            # (T, Dh)
        k_h = qkv[:, E + h * Dh:E + (h + 1) * Dh].astype(MATMUL_DTYPE)    # (T, Dh)
        v_h = qkv[:, 2 * E + h * Dh:2 * E + (h + 1) * Dh].astype(MATMUL_DTYPE)

        s = jnp.einsum('qd,kd->qk', q_h, k_h,
                       preferred_element_type=jnp.float32) + bias          # (T, T)
        s = s - jnp.max(s, axis=-1, keepdims=True)
        p = jnp.exp(s)
        p = p * pl.reciprocal(jnp.sum(p, axis=-1, keepdims=True), approx=True)
        ctx_heads.append(jnp.dot(p.astype(MATMUL_DTYPE), v_h,
                                 preferred_element_type=jnp.float32))      # (T, Dh)

    # Head-major lane concat (matches PyTorch's concat of head outputs).
    ctx = jnp.concatenate(ctx_heads, axis=1)                               # (T, E)

    # ---- output projection + residual + LayerNorm1 --------------------------
    attn_out = jnp.dot(ctx.astype(MATMUL_DTYPE), wout_t_ref[...],
                       preferred_element_type=jnp.float32) + bout_ref[...]
    x1 = xf + attn_out                         # dropout1 == identity (eval)

    def layer_norm(z, gamma, beta):
        mu = jnp.mean(z, axis=-1, keepdims=True)
        var = jnp.mean((z - mu) * (z - mu), axis=-1, keepdims=True)
        return (z - mu) * lax.rsqrt(var + 1e-5) * gamma + beta

    y = layer_norm(x1, g1_ref[...], be1_ref[...])

    # ---- feed-forward + residual + LayerNorm2 --------------------------------
    h1 = jnp.dot(y.astype(MATMUL_DTYPE), w1_t_ref[...],
                 preferred_element_type=jnp.float32) + b1_ref[...]
    h1 = jnp.maximum(h1, 0.0)
    ff = jnp.dot(h1.astype(MATMUL_DTYPE), w2_t_ref[...],
                 preferred_element_type=jnp.float32) + b2_ref[...]
    y2 = layer_norm(y + ff, g2_ref[...], be2_ref[...])                     # (T, E)

    o_ref[...] = y2                            # single dense store


def decoder_layer_pallas(x, params, n_head):
    """x: (L, N, E) float32 (PyTorch batch_first=False).  Returns (L, N, E) f32."""
    L, N, E = x.shape
    F = params["w1"].shape[0]
    Dh = E // n_head
    T = L * N
    scale = 1.0 / math.sqrt(Dh)

    # Zero-cost layout change: (L, N, E) -> (T, E) is a row-major reshape
    # (token row t = l*N + n); no HBM transpose on either side.
    xf = x.reshape(T, E)

    # Additive attention bias: 0 where query/key rows belong to the same batch
    # element, -1e30 otherwise (prob underflows to exactly 0 after softmax).
    # TODO(synk): an external attn_mask / key_padding_mask would be folded into
    #             this same bias here on the host.
    bid = jnp.arange(T, dtype=jnp.int32) % N
    attn_bias = jnp.where(bid[:, None] == bid[None, :], 0.0, -1e30).astype(jnp.float32)

    # One-time host-side weight prep: transpose for row-major matmuls, fold
    # 1/sqrt(Dh) into the Q third of in_proj weight AND bias, ship matmul
    # weights in bf16 (MXU-native; halves resident VMEM).
    q_scale = jnp.concatenate([jnp.full((E,), scale, jnp.float32),
                               jnp.ones((2 * E,), jnp.float32)])
    win_t = (params["in_proj_w"] * q_scale[:, None]).T.astype(MATMUL_DTYPE)  # (E, 3E)
    bin_ = (params["in_proj_b"] * q_scale).reshape(1, 3 * E).astype(jnp.float32)
    wout_t = params["out_proj_w"].T.astype(MATMUL_DTYPE)                    # (E, E)
    bout = params["out_proj_b"].reshape(1, E).astype(jnp.float32)
    w1_t = params["w1"].T.astype(MATMUL_DTYPE)                              # (E, F)
    b1 = params["b1"].reshape(1, F).astype(jnp.float32)
    w2_t = params["w2"].T.astype(MATMUL_DTYPE)                              # (F, E)
    b2 = params["b2"].reshape(1, E).astype(jnp.float32)
    g1 = params["ln1_g"].reshape(1, E).astype(jnp.float32)
    be1 = params["ln1_b"].reshape(1, E).astype(jnp.float32)
    g2 = params["ln2_g"].reshape(1, E).astype(jnp.float32)
    be2 = params["ln2_b"].reshape(1, E).astype(jnp.float32)

    kernel = functools.partial(_decoder_layer_kernel, n_head=n_head)

    # Advisory cost hint for XLA's scheduler around the custom call.
    flops = int(2 * T * E * (3 * E)          # QKV
                + 4 * T * T * E              # scores + PV (all heads)
                + 2 * T * E * E              # out proj
                + 4 * T * E * F)             # FFN
    transcendentals = int(n_head * T * T + n_head * T + 2 * T)
    bytes_accessed = int(4 * T * E * 2 + 4 * T * T
                         + 2 * (3 * E * E + E * E + 2 * E * F)
                         + 4 * (3 * E + 6 * E + F))
    cost = pl.CostEstimate(flops=flops, transcendentals=transcendentals,
                           bytes_accessed=bytes_accessed)

    # Single gridless step: whole (tiny) problem lives in VMEM.  No explicit
    # vmem_limit_bytes (footprint <1 MiB; 64 MiB would be v7x's entire VMEM).
    out = pl.pallas_call(
        kernel,
        out_shape=jax.ShapeDtypeStruct((T, E), jnp.float32),
        cost_estimate=cost,
    )(xf, attn_bias, win_t, bin_, wout_t, bout, w1_t, b1, w2_t, b2,
      g1, be1, g2, be2)

    return out.reshape(L, N, E)


# ---------------- pure-JAX f32 reference (mirrors PyTorch eval semantics) ----
def decoder_layer_ref(x, params, n_head):
    L, N, E = x.shape
    Dh = E // n_head
    scale = 1.0 / math.sqrt(Dh)

    def per_batch(xb):  # xb: (L, E)
        qkv = xb @ params["in_proj_w"].T + params["in_proj_b"]
        q, k, v = qkv[:, :E], qkv[:, E:2 * E], qkv[:, 2 * E:]
        ctx = []
        for h in range(n_head):
            sl = slice(h * Dh, (h + 1) * Dh)
            s = (q[:, sl] * scale) @ k[:, sl].T
            p = jax.nn.softmax(s, axis=-1)
            ctx.append(p @ v[:, sl])
        ctx = jnp.concatenate(ctx, axis=-1)
        attn = ctx @ params["out_proj_w"].T + params["out_proj_b"]
        x1 = xb + attn

        def ln(z, g, b):
            mu = jnp.mean(z, axis=-1, keepdims=True)
            var = jnp.mean((z - mu) ** 2, axis=-1, keepdims=True)
            return (z - mu) / jnp.sqrt(var + 1e-5) * g + b

        y = ln(x1, params["ln1_g"], params["ln1_b"])
        h1 = jnp.maximum(y @ params["w1"].T + params["b1"], 0.0)
        ff = h1 @ params["w2"].T + params["b2"]
        return ln(y + ff, params["ln2_g"], params["ln2_b"])

    return jax.vmap(per_batch, in_axes=1, out_axes=1)(x)


if __name__ == "__main__":
    # Small shapes consistent with the module's forward.
    L, N = 8, 2           # seq_len, batch
    d_model, n_head, d_ff = 32, 4, 64

    key = jax.random.PRNGKey(0)
    keys = jax.random.split(key, 9)

    def init(k, shape, scale=0.1):
        return (scale * jax.random.normal(k, shape)).astype(jnp.float32)

    params = {
        "in_proj_w": init(keys[0], (3 * d_model, d_model)),
        "in_proj_b": init(keys[1], (3 * d_model,)),
        "out_proj_w": init(keys[2], (d_model, d_model)),
        "out_proj_b": init(keys[3], (d_model,)),
        "w1": init(keys[4], (d_ff, d_model)),
        "b1": init(keys[5], (d_ff,)),
        "w2": init(keys[6], (d_model, d_ff)),
        "b2": init(keys[7], (d_model,)),
        "ln1_g": jnp.ones((d_model,), jnp.float32),
        "ln1_b": jnp.zeros((d_model,), jnp.float32),
        "ln2_g": jnp.ones((d_model,), jnp.float32),
        "ln2_b": jnp.zeros((d_model,), jnp.float32),
    }

    x = jax.random.normal(keys[8], (L, N, d_model), jnp.float32)

    out = decoder_layer_pallas(x, params, n_head)
    out = jax.block_until_ready(out)

    ref = decoder_layer_ref(x, params, n_head)
    assert out.shape == (L, N, d_model), out.shape
    # bf16 MXU operands (f32 accumulation) + approx reciprocal vs a pure-f32
    # reference: allow the corresponding ~1% deviation.
    assert jnp.allclose(out, ref, atol=3e-2, rtol=3e-2), (
        float(jnp.max(jnp.abs(out - ref))))

    print("KERNEL_OK")
</pallas_src>

<mosaic_0001>
module attributes {stable_mosaic.version = 11 : i64} {
  func.func @_decoder_layer_kernel(%arg0: memref<16x32xf32, #tpu.memory_space<vmem>>, %arg1: memref<16x16xf32, #tpu.memory_space<vmem>>, %arg2: memref<32x96xbf16, #tpu.memory_space<vmem>>, %arg3: memref<1x96xf32, #tpu.memory_space<vmem>>, %arg4: memref<32x32xbf16, #tpu.memory_space<vmem>>, %arg5: memref<1x32xf32, #tpu.memory_space<vmem>>, %arg6: memref<32x64xbf16, #tpu.memory_space<vmem>>, %arg7: memref<1x64xf32, #tpu.memory_space<vmem>>, %arg8: memref<64x32xbf16, #tpu.memory_space<vmem>>, %arg9: memref<1x32xf32, #tpu.memory_space<vmem>>, %arg10: memref<1x32xf32, #tpu.memory_space<vmem>>, %arg11: memref<1x32xf32, #tpu.memory_space<vmem>>, %arg12: memref<1x32xf32, #tpu.memory_space<vmem>>, %arg13: memref<1x32xf32, #tpu.memory_space<vmem>>, %arg14: memref<16x32xf32, #tpu.memory_space<vmem>>) attributes {dimension_semantics = [], scalar_prefetch = 0 : i64, scratch_operands = 0 : i64, tpu.core_type = #tpu.core_type<tc>} {
    %c0 = arith.constant 0 : index
    %c0_0 = arith.constant 0 : index
    %0 = vector.load %arg0[%c0, %c0_0] : memref<16x32xf32, #tpu.memory_space<vmem>>, vector<16x32xf32>
    %c0_1 = arith.constant 0 : index
    %c0_2 = arith.constant 0 : index
    %1 = vector.load %arg1[%c0_1, %c0_2] : memref<16x16xf32, #tpu.memory_space<vmem>>, vector<16x16xf32>
    %2 = arith.truncf %0 : vector<16x32xf32> to vector<16x32xbf16>
    %c0_3 = arith.constant 0 : index
    %c0_4 = arith.constant 0 : index
    %3 = vector.load %arg2[%c0_3, %c0_4] : memref<32x96xbf16, #tpu.memory_space<vmem>>, vector<32x96xbf16>
    %cst = arith.constant dense<0.000000e+00> : vector<16x96xf32>
    %4 = tpu.matmul %2, %3, %cst {dimension_numbers = #tpu.dot_dimension_numbers<[1], [0], [0], [1], [0, 0, 1, 1], [], []>} : vector<16x32xbf16>, vector<32x96xbf16>, vector<16x96xf32> -> vector<16x96xf32>
    %c0_5 = arith.constant 0 : index
    %c0_6 = arith.constant 0 : index
    %5 = vector.load %arg3[%c0_5, %c0_6] : memref<1x96xf32, #tpu.memory_space<vmem>>, vector<1x96xf32>
    %6 = vector.broadcast %5 : vector<1x96xf32> to vector<16x96xf32>
    %7 = arith.addf %4, %6 : vector<16x96xf32>
    %8 = vector.extract_strided_slice %7 {offsets = [0, 0], sizes = [16, 8], strides = [1, 1]} : vector<16x96xf32> to vector<16x8xf32>
    %9 = arith.truncf %8 : vector<16x8xf32> to vector<16x8xbf16>
    %10 = vector.extract_strided_slice %7 {offsets = [0, 32], sizes = [16, 8], strides = [1, 1]} : vector<16x96xf32> to vector<16x8xf32>
    %11 = arith.truncf %10 : vector<16x8xf32> to vector<16x8xbf16>
    %12 = vector.extract_strided_slice %7 {offsets = [0, 64], sizes = [16, 8], strides = [1, 1]} : vector<16x96xf32> to vector<16x8xf32>
    %13 = arith.truncf %12 : vector<16x8xf32> to vector<16x8xbf16>
    "tpu.trace_start"() <{level = 10 : i32, message = "qd,kd->qk"}> : () -> ()
    %cst_7 = arith.constant dense<0.000000e+00> : vector<16x16xf32>
    %14 = tpu.matmul %9, %11, %cst_7 {dimension_numbers = #tpu.dot_dimension_numbers<[1], [1], [0], [0], [0, 0, 1, 0], [], []>} : vector<16x8xbf16>, vector<16x8xbf16>, vector<16x16xf32> -> vector<16x16xf32>
    "tpu.trace_stop"() : () -> ()
    %15 = arith.addf %14, %1 : vector<16x16xf32>
    %cst_8 = arith.constant dense<0xFF800000> : vector<16xf32>
    %16 = vector.multi_reduction <maximumf>, %15, %cst_8 [1] : vector<16x16xf32> to vector<16xf32>
    %17 = vector.shape_cast %16 : vector<16xf32> to vector<16x1xf32>
    %18 = vector.broadcast %17 : vector<16x1xf32> to vector<16x16xf32>
    %19 = arith.subf %15, %18 : vector<16x16xf32>
    %20 = math.exp %19 : vector<16x16xf32>
    %cst_9 = arith.constant dense<0.000000e+00> : vector<16xf32>
    %21 = vector.multi_reduction <add>, %20, %cst_9 [1] : vector<16x16xf32> to vector<16xf32>
    %22 = vector.shape_cast %21 : vector<16xf32> to vector<16x1xf32>
    %23 = tpu.reciprocal %22 {approx = true} : vector<16x1xf32> -> vector<16x1xf32>
    %24 = vector.broadcast %23 : vector<16x1xf32> to vector<16x16xf32>
    %25 = arith.mulf %20, %24 : vector<16x16xf32>
    %26 = arith.truncf %25 : vector<16x16xf32> to vector<16x16xbf16>
    %cst_10 = arith.constant dense<0.000000e+00> : vector<16x8xf32>
    %27 = tpu.matmul %26, %13, %cst_10 {dimension_numbers = #tpu.dot_dimension_numbers<[1], [0], [0], [1], [0, 0, 1, 1], [], []>} : vector<16x16xbf16>, vector<16x8xbf16>, vector<16x8xf32> -> vector<16x8xf32>
    %28 = vector.extract_strided_slice %7 {offsets = [0, 8], sizes = [16, 8], strides = [1, 1]} : vector<16x96xf32> to vector<16x8xf32>
    %29 = arith.truncf %28 : vector<16x8xf32> to vector<16x8xbf16>
    %30 = vector.extract_strided_slice %7 {offsets = [0, 40], sizes = [16, 8], strides = [1, 1]} : vector<16x96xf32> to vector<16x8xf32>
    %31 = arith.truncf %30 : vector<16x8xf32> to vector<16x8xbf16>
    %32 = vector.extract_strided_slice %7 {offsets = [0, 72], sizes = [16, 8], strides = [1, 1]} : vector<16x96xf32> to vector<16x8xf32>
    %33 = arith.truncf %32 : vector<16x8xf32> to vector<16x8xbf16>
    "tpu.trace_start"() <{level = 10 : i32, message = "qd,kd->qk"}> : () -> ()
    %cst_11 = arith.constant dense<0.000000e+00> : vector<16x16xf32>
    %34 = tpu.matmul %29, %31, %cst_11 {dimension_numbers = #tpu.dot_dimension_numbers<[1], [1], [0], [0], [0, 0, 1, 0], [], []>} : vector<16x8xbf16>, vector<16x8xbf16>, vector<16x16xf32> -> vector<16x16xf32>
    "tpu.trace_stop"() : () -> ()
    %35 = arith.addf %34, %1 : vector<16x16xf32>
    %cst_12 = arith.constant dense<0xFF800000> : vector<16xf32>
    %36 = vector.multi_reduction <maximumf>, %35, %cst_12 [1] : vector<16x16xf32> to vector<16xf32>
    %37 = vector.shape_cast %36 : vector<16xf32> to vector<16x1xf32>
    %38 = vector.broadcast %37 : vector<16x1xf32> to vector<16x16xf32>
    %39 = arith.subf %35, %38 : vector<16x16xf32>
    %40 = math.exp %39 : vector<16x16xf32>
    %cst_13 = arith.constant dense<0.000000e+00> : vector<16xf32>
    %41 = vector.multi_reduction <add>, %40, %cst_13 [1] : vector<16x16xf32> to vector<16xf32>
    %42 = vector.shape_cast %41 : vector<16xf32> to vector<16x1xf32>
    %43 = tpu.reciprocal %42 {approx = true} : vector<16x1xf32> -> vector<16x1xf32>
    %44 = vector.broadcast %43 : vector<16x1xf32> to vector<16x16xf32>
    %45 = arith.mulf %40, %44 : vector<16x16xf32>
    %46 = arith.truncf %45 : vector<16x16xf32> to vector<16x16xbf16>
    %cst_14 = arith.constant dense<0.000000e+00> : vector<16x8xf32>
    %47 = tpu.matmul %46, %33, %cst_14 {dimension_numbers = #tpu.dot_dimension_numbers<[1], [0], [0], [1], [0, 0, 1, 1], [], []>} : vector<16x16xbf16>, vector<16x8xbf16>, vector<16x8xf32> -> vector<16x8xf32>
    %48 = vector.extract_strided_slice %7 {offsets = [0, 16], sizes = [16, 8], strides = [1, 1]} : vector<16x96xf32> to vector<16x8xf32>
    %49 = arith.truncf %48 : vector<16x8xf32> to vector<16x8xbf16>
    %50 = vector.extract_strided_slice %7 {offsets = [0, 48], sizes = [16, 8], strides = [1, 1]} : vector<16x96xf32> to vector<16x8xf32>
    %51 = arith.truncf %50 : vector<16x8xf32> to vector<16x8xbf16>
    %52 = vector.extract_strided_slice %7 {offsets = [0, 80], sizes = [16, 8], strides = [1, 1]} : vector<16x96xf32> to vector<16x8xf32>
    %53 = arith.truncf %52 : vector<16x8xf32> to vector<16x8xbf16>
    "tpu.trace_start"() <{level = 10 : i32, message = "qd,kd->qk"}> : () -> ()
    %cst_15 = arith.constant dense<0.000000e+00> : vector<16x16xf32>
    %54 = tpu.matmul %49, %51, %cst_15 {dimension_numbers = #tpu.dot_dimension_numbers<[1], [1], [0], [0], [0, 0, 1, 0], [], []>} : vector<16x8xbf16>, vector<16x8xbf16>, vector<16x16xf32> -> vector<16x16xf32>
    "tpu.trace_stop"() : () -> ()
    %55 = arith.addf %54, %1 : vector<16x16xf32>
    %cst_16 = arith.constant dense<0xFF800000> : vector<16xf32>
    %56 = vector.multi_reduction <maximumf>, %55, %cst_16 [1] : vector<16x16xf32> to vector<16xf32>
    %57 = vector.shape_cast %56 : vector<16xf32> to vector<16x1xf32>
    %58 = vector.broadcast %57 : vector<16x1xf32> to vector<16x16xf32>
    %59 = arith.subf %55, %58 : vector<16x16xf32>
    %60 = math.exp %59 : vector<16x16xf32>
    %cst_17 = arith.constant dense<0.000000e+00> : vector<16xf32>
    %61 = vector.multi_reduction <add>, %60, %cst_17 [1] : vector<16x16xf32> to vector<16xf32>
    %62 = vector.shape_cast %61 : vector<16xf32> to vector<16x1xf32>
    %63 = tpu.reciprocal %62 {approx = true} : vector<16x1xf32> -> vector<16x1xf32>
    %64 = vector.broadcast %63 : vector<16x1xf32> to vector<16x16xf32>
    %65 = arith.mulf %60, %64 : vector<16x16xf32>
    %66 = arith.truncf %65 : vector<16x16xf32> to vector<16x16xbf16>
    %cst_18 = arith.constant dense<0.000000e+00> : vector<16x8xf32>
    %67 = tpu.matmul %66, %53, %cst_18 {dimension_numbers = #tpu.dot_dimension_numbers<[1], [0], [0], [1], [0, 0, 1, 1], [], []>} : vector<16x16xbf16>, vector<16x8xbf16>, vector<16x8xf32> -> vector<16x8xf32>
    %68 = vector.extract_strided_slice %7 {offsets = [0, 24], sizes = [16, 8], strides = [1, 1]} : vector<16x96xf32> to vector<16x8xf32>
    %69 = arith.truncf %68 : vector<16x8xf32> to vector<16x8xbf16>
    %70 = vector.extract_strided_slice %7 {offsets = [0, 56], sizes = [16, 8], strides = [1, 1]} : vector<16x96xf32> to vector<16x8xf32>
    %71 = arith.truncf %70 : vector<16x8xf32> to vector<16x8xbf16>
    %72 = vector.extract_strided_slice %7 {offsets = [0, 88], sizes = [16, 8], strides = [1, 1]} : vector<16x96xf32> to vector<16x8xf32>
    %73 = arith.truncf %72 : vector<16x8xf32> to vector<16x8xbf16>
    "tpu.trace_start"() <{level = 10 : i32, message = "qd,kd->qk"}> : () -> ()
    %cst_19 = arith.constant dense<0.000000e+00> : vector<16x16xf32>
    %74 = tpu.matmul %69, %71, %cst_19 {dimension_numbers = #tpu.dot_dimension_numbers<[1], [1], [0], [0], [0, 0, 1, 0], [], []>} : vector<16x8xbf16>, vector<16x8xbf16>, vector<16x16xf32> -> vector<16x16xf32>
    "tpu.trace_stop"() : () -> ()
    %75 = arith.addf %74, %1 : vector<16x16xf32>
    %cst_20 = arith.constant dense<0xFF800000> : vector<16xf32>
    %76 = vector.multi_reduction <maximumf>, %75, %cst_20 [1] : vector<16x16xf32> to vector<16xf32>
    %77 = vector.shape_cast %76 : vector<16xf32> to vector<16x1xf32>
    %78 = vector.broadcast %77 : vector<16x1xf32> to vector<16x16xf32>
    %79 = arith.subf %75, %78 : vector<16x16xf32>
    %80 = math.exp %79 : vector<16x16xf32>
    %cst_21 = arith.constant dense<0.000000e+00> : vector<16xf32>
    %81 = vector.multi_reduction <add>, %80, %cst_21 [1] : vector<16x16xf32> to vector<16xf32>
    %82 = vector.shape_cast %81 : vector<16xf32> to vector<16x1xf32>
    %83 = tpu.reciprocal %82 {approx = true} : vector<16x1xf32> -> vector<16x1xf32>
    %84 = vector.broadcast %83 : vector<16x1xf32> to vector<16x16xf32>
    %85 = arith.mulf %80, %84 : vector<16x16xf32>
    %86 = arith.truncf %85 : vector<16x16xf32> to vector<16x16xbf16>
    %cst_22 = arith.constant dense<0.000000e+00> : vector<16x8xf32>
    %87 = tpu.matmul %86, %73, %cst_22 {dimension_numbers = #tpu.dot_dimension_numbers<[1], [0], [0], [1], [0, 0, 1, 1], [], []>} : vector<16x16xbf16>, vector<16x8xbf16>, vector<16x8xf32> -> vector<16x8xf32>
    %88 = tpu.concatenate %27, %47, %67, %87 in 1 : vector<16x8xf32>, vector<16x8xf32>, vector<16x8xf32>, vector<16x8xf32> -> vector<16x32xf32>
    %89 = arith.truncf %88 : vector<16x32xf32> to vector<16x32xbf16>
    %c0_23 = arith.constant 0 : index
    %c0_24 = arith.constant 0 : index
    %90 = vector.load %arg4[%c0_23, %c0_24] : memref<32x32xbf16, #tpu.memory_space<vmem>>, vector<32x32xbf16>
    %cst_25 = arith.constant dense<0.000000e+00> : vector<16x32xf32>
    %91 = tpu.matmul %89, %90, %cst_25 {dimension_numbers = #tpu.dot_dimension_numbers<[1], [0], [0], [1], [0, 0, 1, 1], [], []>} : vector<16x32xbf16>, vector<32x32xbf16>, vector<16x32xf32> -> vector<16x32xf32>
    %c0_26 = arith.constant 0 : index
    %c0_27 = arith.constant 0 : index
    %92 = vector.load %arg5[%c0_26, %c0_27] : memref<1x32xf32, #tpu.memory_space<vmem>>, vector<1x32xf32>
    %93 = vector.broadcast %92 : vector<1x32xf32> to vector<16x32xf32>
    %94 = arith.addf %91, %93 : vector<16x32xf32>
    %95 = arith.addf %0, %94 : vector<16x32xf32>
    %c0_28 = arith.constant 0 : index
    %c0_29 = arith.constant 0 : index
    %96 = vector.load %arg10[%c0_28, %c0_29] : memref<1x32xf32, #tpu.memory_space<vmem>>, vector<1x32xf32>
    %c0_30 = arith.constant 0 : index
    %c0_31 = arith.constant 0 : index
    %97 = vector.load %arg11[%c0_30, %c0_31] : memref<1x32xf32, #tpu.memory_space<vmem>>, vector<1x32xf32>
    %cst_32 = arith.constant dense<0.000000e+00> : vector<16xf32>
    %98 = vector.multi_reduction <add>, %95, %cst_32 [1] : vector<16x32xf32> to vector<16xf32>
    %99 = vector.shape_cast %98 : vector<16xf32> to vector<16x1xf32>
    %cst_33 = arith.constant 3.200000e+01 : f32
    %100 = vector.broadcast %cst_33 : f32 to vector<16x1xf32>
    %101 = arith.divf %99, %100 : vector<16x1xf32>
    %102 = vector.broadcast %101 : vector<16x1xf32> to vector<16x32xf32>
    %103 = arith.subf %95, %102 : vector<16x32xf32>
    %104 = vector.broadcast %101 : vector<16x1xf32> to vector<16x32xf32>
    %105 = arith.subf %95, %104 : vector<16x32xf32>
    %106 = arith.mulf %103, %105 : vector<16x32xf32>
    %cst_34 = arith.constant dense<0.000000e+00> : vector<16xf32>
    %107 = vector.multi_reduction <add>, %106, %cst_34 [1] : vector<16x32xf32> to vector<16xf32>
    %108 = vector.shape_cast %107 : vector<16xf32> to vector<16x1xf32>
    %cst_35 = arith.constant 3.200000e+01 : f32
    %109 = vector.broadcast %cst_35 : f32 to vector<16x1xf32>
    %110 = arith.divf %108, %109 : vector<16x1xf32>
    %111 = vector.broadcast %101 : vector<16x1xf32> to vector<16x32xf32>
    %112 = arith.subf %95, %111 : vector<16x32xf32>
    %cst_36 = arith.constant 9.99999974E-6 : f32
    %113 = vector.broadcast %cst_36 : f32 to vector<16x1xf32>
    %114 = arith.addf %110, %113 : vector<16x1xf32>
    %115 = math.rsqrt %114 : vector<16x1xf32>
    %116 = vector.broadcast %115 : vector<16x1xf32> to vector<16x32xf32>
    %117 = arith.mulf %112, %116 : vector<16x32xf32>
    %118 = vector.broadcast %96 : vector<1x32xf32> to vector<16x32xf32>
    %119 = arith.mulf %117, %118 : vector<16x32xf32>
    %120 = vector.broadcast %97 : vector<1x32xf32> to vector<16x32xf32>
    %121 = arith.addf %119, %120 : vector<16x32xf32>
    %122 = arith.truncf %121 : vector<16x32xf32> to vector<16x32xbf16>
    %c0_37 = arith.constant 0 : index
    %c0_38 = arith.constant 0 : index
    %123 = vector.load %arg6[%c0_37, %c0_38] : memref<32x64xbf16, #tpu.memory_space<vmem>>, vector<32x64xbf16>
    %cst_39 = arith.constant dense<0.000000e+00> : vector<16x64xf32>
    %124 = tpu.matmul %122, %123, %cst_39 {dimension_numbers = #tpu.dot_dimension_numbers<[1], [0], [0], [1], [0, 0, 1, 1], [], []>} : vector<16x32xbf16>, vector<32x64xbf16>, vector<16x64xf32> -> vector<16x64xf32>
    %c0_40 = arith.constant 0 : index
    %c0_41 = arith.constant 0 : index
    %125 = vector.load %arg7[%c0_40, %c0_41] : memref<1x64xf32, #tpu.memory_space<vmem>>, vector<1x64xf32>
    %126 = vector.broadcast %125 : vector<1x64xf32> to vector<16x64xf32>
    %127 = arith.addf %124, %126 : vector<16x64xf32>
    %cst_42 = arith.constant 0.000000e+00 : f32
    %128 = vector.broadcast %cst_42 : f32 to vector<16x64xf32>
    %129 = arith.maximumf %127, %128 : vector<16x64xf32>
    %130 = arith.truncf %129 : vector<16x64xf32> to vector<16x64xbf16>
    %c0_43 = arith.constant 0 : index
    %c0_44 = arith.constant 0 : index
    %131 = vector.load %arg8[%c0_43, %c0_44] : memref<64x32xbf16, #tpu.memory_space<vmem>>, vector<64x32xbf16>
    %cst_45 = arith.constant dense<0.000000e+00> : vector<16x32xf32>
    %132 = tpu.matmul %130, %131, %cst_45 {dimension_numbers = #tpu.dot_dimension_numbers<[1], [0], [0], [1], [0, 0, 1, 1], [], []>} : vector<16x64xbf16>, vector<64x32xbf16>, vector<16x32xf32> -> vector<16x32xf32>
    %c0_46 = arith.constant 0 : index
    %c0_47 = arith.constant 0 : index
    %133 = vector.load %arg9[%c0_46, %c0_47] : memref<1x32xf32, #tpu.memory_space<vmem>>, vector<1x32xf32>
    %134 = vector.broadcast %133 : vector<1x32xf32> to vector<16x32xf32>
    %135 = arith.addf %132, %134 : vector<16x32xf32>
    %136 = arith.addf %121, %135 : vector<16x32xf32>
    %c0_48 = arith.constant 0 : index
    %c0_49 = arith.constant 0 : index
    %137 = vector.load %arg12[%c0_48, %c0_49] : memref<1x32xf32, #tpu.memory_space<vmem>>, vector<1x32xf32>
    %c0_50 = arith.constant 0 : index
    %c0_51 = arith.constant 0 : index
    %138 = vector.load %arg13[%c0_50, %c0_51] : memref<1x32xf32, #tpu.memory_space<vmem>>, vector<1x32xf32>
    %cst_52 = arith.constant dense<0.000000e+00> : vector<16xf32>
    %139 = vector.multi_reduction <add>, %136, %cst_52 [1] : vector<16x32xf32> to vector<16xf32>
    %140 = vector.shape_cast %139 : vector<16xf32> to vector<16x1xf32>
    %cst_53 = arith.constant 3.200000e+01 : f32
    %141 = vector.broadcast %cst_53 : f32 to vector<16x1xf32>
    %142 = arith.divf %140, %141 : vector<16x1xf32>
    %143 = vector.broadcast %142 : vector<16x1xf32> to vector<16x32xf32>
    %144 = arith.subf %136, %143 : vector<16x32xf32>
    %145 = vector.broadcast %142 : vector<16x1xf32> to vector<16x32xf32>
    %146 = arith.subf %136, %145 : vector<16x32xf32>
    %147 = arith.mulf %144, %146 : vector<16x32xf32>
    %cst_54 = arith.constant dense<0.000000e+00> : vector<16xf32>
    %148 = vector.multi_reduction <add>, %147, %cst_54 [1] : vector<16x32xf32> to vector<16xf32>
    %149 = vector.shape_cast %148 : vector<16xf32> to vector<16x1xf32>
    %cst_55 = arith.constant 3.200000e+01 : f32
    %150 = vector.broadcast %cst_55 : f32 to vector<16x1xf32>
    %151 = arith.divf %149, %150 : vector<16x1xf32>
    %152 = vector.broadcast %142 : vector<16x1xf32> to vector<16x32xf32>
    %153 = arith.subf %136, %152 : vector<16x32xf32>
    %cst_56 = arith.constant 9.99999974E-6 : f32
    %154 = vector.broadcast %cst_56 : f32 to vector<16x1xf32>
    %155 = arith.addf %151, %154 : vector<16x1xf32>
    %156 = math.rsqrt %155 : vector<16x1xf32>
    %157 = vector.broadcast %156 : vector<16x1xf32> to vector<16x32xf32>
    %158 = arith.mulf %153, %157 : vector<16x32xf32>
    %159 = vector.broadcast %137 : vector<1x32xf32> to vector<16x32xf32>
    %160 = arith.mulf %158, %159 : vector<16x32xf32>
    %161 = vector.broadcast %138 : vector<1x32xf32> to vector<16x32xf32>
    %162 = arith.addf %160, %161 : vector<16x32xf32>
    %c0_57 = arith.constant 0 : index
    %c0_58 = arith.constant 0 : index
    %163 = vector.load %arg14[%c0_57, %c0_58] : memref<16x32xf32, #tpu.memory_space<vmem>>, vector<16x32xf32>
    tpu.vector_store %arg14[%c0_57, %c0_58], %162 {strides = array<i32>} : memref<16x32xf32, #tpu.memory_space<vmem>>, vector<16x32xf32>,
    return
  }
}

</mosaic_0001>

<llo_original>
// kernel: tpu_custom_call.1
$region0: #{tpu_custom_call.1}
  #allocation0 [shape = 'u32[]', space=smem, size = 0x4, offset = 0x4, fixed_abs, tag = 'smem constant byte address 0x4 - core index']
  #allocation1 [shape = 'u32[144,128]{1,0:T(1,128)}', space=vmem, size = 0x12000, scoped, tag = 'internal scratch']
  %s0 = inlined_call_operand.vmem [shape: f32[16,32], index: 0, kind: input, shape index: {}]
  %s1 = inlined_call_operand.vmem [shape: f32[16,16], index: 1, kind: input, shape index: {}]
  %s2 = inlined_call_operand.vmem [shape: bf16[32,96], index: 2, kind: input, shape index: {}]
  %s3 = inlined_call_operand.vmem [shape: f32[1,96], index: 3, kind: input, shape index: {}]
  %s4 = inlined_call_operand.hbm [shape: bf16[32,32], index: 4, kind: input, shape index: {}]
  %s5 = inlined_call_operand.vmem [shape: f32[1,32], index: 5, kind: input, shape index: {}]
  %s6 = inlined_call_operand.hbm [shape: bf16[32,64], index: 6, kind: input, shape index: {}]
  %s7 = inlined_call_operand.vmem [shape: f32[1,64], index: 7, kind: input, shape index: {}]
  %s8 = inlined_call_operand.vmem [shape: bf16[64,32], index: 8, kind: input, shape index: {}]
  %s9 = inlined_call_operand.vmem [shape: f32[1,32], index: 9, kind: input, shape index: {}]
  %s10 = inlined_call_operand.vmem [shape: f32[1,32], index: 10, kind: input, shape index: {}]
  %s11 = inlined_call_operand.vmem [shape: f32[1,32], index: 11, kind: input, shape index: {}]
  %s12 = inlined_call_operand.vmem [shape: f32[1,32], index: 12, kind: input, shape index: {}]
  %s13 = inlined_call_operand.vmem [shape: f32[1,32], index: 13, kind: input, shape index: {}]
  %s14 = inlined_call_operand.hbm [shape: f32[16,32], index: 14, kind: output, shape index: {}]
  %s15 = sld [smem:[#allocation0]]
  $region74: #{tpu_custom_call.1} parent=0
    _
  %s17 = ssub.s32 1, %s15
  %s18 = scalar_select 0, %s17, %s15
  $region1: #{tpu_custom_call.1} parent=0
    #allocation2 [shape = 'u8[8192]{0}', space=vmem, size = 0x2000, scoped, tag = 'input window, operand 4, single buffered']
    #allocation3 [shape = 's32[1]{0}', space=sflag, size = 0x4, scoped, tag = 'scoped memory for tpu_custom_call.1']
    #allocation4 [shape = 's32[1]{0}', space=sflag, size = 0x4, scoped, tag = 'scoped memory for tpu_custom_call.1']
    #allocation5 [shape = 'u8[8192]{0}', space=vmem, size = 0x2000, scoped, tag = 'input window, operand 6, single buffered']
    #allocation6 [shape = 's32[1]{0}', space=sflag, size = 0x4, scoped, tag = 'scoped memory for tpu_custom_call.1']
    #allocation7 [shape = 'u8[8192]{0}', space=vmem, size = 0x2000, scoped, tag = 'output window, operand 0, single buffered']
    %19 = vsyncpa [#allocation3], 0
    %20 = vsyncpa [#allocation6], 0
    %21 = vsyncpa [#allocation4], 0
    // Predicated region
    $region2: #{tpu_custom_call.1} parent=1 // pred_check
      _
    $region3: #{tpu_custom_call.1} parent=1 // pred_check_branch
      %23 = sbr.rel (0) target = $region5
    $region4: #{tpu_custom_call.1} parent=1 // pred_region
      _
    $region5: #{tpu_custom_call.1} parent=1 // pred_fallthru
      _
    // Predicated region
    $region6: #{tpu_custom_call.1} parent=1 // pred_check
      _
    $region7: #{tpu_custom_call.1} parent=1 // pred_check_branch
      %25 = sbr.rel (0) target = $region9
    $region8: #{tpu_custom_call.1} parent=1 // pred_region
      _
    $region9: #{tpu_custom_call.1} parent=1 // pred_fallthru
      _
    // Predicated region
    $region10: #{tpu_custom_call.1} parent=1 // pred_check
      _
    $region11: #{tpu_custom_call.1} parent=1 // pred_check_branch
      %27 = sbr.rel (0) target = $region13
    $region12: #{tpu_custom_call.1} parent=1 // pred_region
      _
    $region13: #{tpu_custom_call.1} parent=1 // pred_fallthru
      _
    // Predicated region
    $region14: #{tpu_custom_call.1} parent=1 // pred_check
      _
    $region15: #{tpu_custom_call.1} parent=1 // pred_check_branch
      %29 = sbr.rel (0) target = $region17
    $region16: #{tpu_custom_call.1} parent=1 // pred_region
      _
    $region17: #{tpu_custom_call.1} parent=1 // pred_fallthru
      _
    // Predicated region
    $region18: #{tpu_custom_call.1} parent=1 // pred_check
      _
    $region19: #{tpu_custom_call.1} parent=1 // pred_check_branch
      %31 = sbr.rel (0) target = $region21
    $region20: #{tpu_custom_call.1} parent=1 // pred_region
      %s33 = ssub.s32 256, 256
      %34 = vsyncadd [#allocation3], %s33
      %s35 = sshll.u32 [#allocation2], 4
      %s36 = int_to_ptr.vmem [resolvable:$true] %s35
      %41 = dma.hbm_to_vmem [thread:$0]  %s4, 256, %s36, [#allocation3], 64, 64, 4
    $region21: #{tpu_custom_call.1} parent=1 // pred_fallthru
      _
    // Predicated region
    $region22: #{tpu_custom_call.1} parent=1 // pred_check
      _
    $region23: #{tpu_custom_call.1} parent=1 // pred_check_branch
      %43 = sbr.rel (0) target = $region25
    $region24: #{tpu_custom_call.1} parent=1 // pred_region
      _
    $region25: #{tpu_custom_call.1} parent=1 // pred_fallthru
      _
    // Predicated region
    $region26: #{tpu_custom_call.1} parent=1 // pred_check
      _
    $region27: #{tpu_custom_call.1} parent=1 // pred_check_branch
      %45 = sbr.rel (0) target = $region29
    $region28: #{tpu_custom_call.1} parent=1 // pred_region
      %s47 = ssub.s32 256, 256
      %48 = vsyncadd [#allocation6], %s47
      %s49 = sshll.u32 [#allocation5], 4
      %s50 = int_to_ptr.vmem [resolvable:$true] %s49
      %55 = dma.hbm_to_vmem [thread:$0]  %s6, 256, %s50, [#allocation6], 64, 64, 4
    $region29: #{tpu_custom_call.1} parent=1 // pred_fallthru
      _
    // Predicated region
    $region30: #{tpu_custom_call.1} parent=1 // pred_check
      _
    $region31: #{tpu_custom_call.1} parent=1 // pred_check_branch
      %57 = sbr.rel (0) target = $region33
    $region32: #{tpu_custom_call.1} parent=1 // pred_region
      _
    $region33: #{tpu_custom_call.1} parent=1 // pred_fallthru
      _
    // Predicated region
    $region34: #{tpu_custom_call.1} parent=1 // pred_check
      _
    $region35: #{tpu_custom_call.1} parent=1 // pred_check_branch
      %59 = sbr.rel (0) target = $region37
    $region36: #{tpu_custom_call.1} parent=1 // pred_region
      _
    $region37: #{tpu_custom_call.1} parent=1 // pred_fallthru
      _
    // Predicated region
    $region38: #{tpu_custom_call.1} parent=1 // pred_check
      _
    $region39: #{tpu_custom_call.1} parent=1 // pred_check_branch
      %61 = sbr.rel (0) target = $region41
    $region40: #{tpu_custom_call.1} parent=1 // pred_region
      _
    $region41: #{tpu_custom_call.1} parent=1 // pred_fallthru
      _
    // Predicated region
    $region42: #{tpu_custom_call.1} parent=1 // pred_check
      _
    $region43: #{tpu_custom_call.1} parent=1 // pred_check_branch
      %63 = sbr.rel (0) target = $region45
    $region44: #{tpu_custom_call.1} parent=1 // pred_region
      _
    $region45: #{tpu_custom_call.1} parent=1 // pred_fallthru
      _
    // Predicated region
    $region46: #{tpu_custom_call.1} parent=1 // pred_check
      _
    $region47: #{tpu_custom_call.1} parent=1 // pred_check_branch
      %65 = sbr.rel (0) target = $region49
    $region48: #{tpu_custom_call.1} parent=1 // pred_region
      _
    $region49: #{tpu_custom_call.1} parent=1 // pred_fallthru
      _
    // Predicated region
    $region50: #{tpu_custom_call.1} parent=1 // pred_check
      _
    $region51: #{tpu_custom_call.1} parent=1 // pred_check_branch
      %67 = sbr.rel (0) target = $region53
    $region52: #{tpu_custom_call.1} parent=1 // pred_region
      _
    $region53: #{tpu_custom_call.1} parent=1 // pred_fallthru
      _
    // Predicated region
    $region54: #{tpu_custom_call.1} parent=1 // pred_check
      _
    $region55: #{tpu_custom_call.1} parent=1 // pred_check_branch
      %69 = sbr.rel (0) target = $region57
    $region56: #{tpu_custom_call.1} parent=1 // pred_region
      _
    $region57: #{tpu_custom_call.1} parent=1 // pred_fallthru
      _
    // Predicated region
    $region58: #{tpu_custom_call.1} parent=1 // pred_check
      _
    $region59: #{tpu_custom_call.1} parent=1 // pred_check_branch
      %71 = sbr.rel (0) target = $region61
    $region60: #{tpu_custom_call.1} parent=1 // pred_region
      %72 = dma.done [#allocation3], 256
    $region61: #{tpu_custom_call.1} parent=1 // pred_fallthru
      _
    // Predicated region
    $region62: #{tpu_custom_call.1} parent=1 // pred_check
      _
    $region63: #{tpu_custom_call.1} parent=1 // pred_check_branch
      %74 = sbr.rel (0) target = $region65
    $region64: #{tpu_custom_call.1} parent=1 // pred_region
      %75 = dma.done [#allocation6], 256
    $region65: #{tpu_custom_call.1} parent=1 // pred_fallthru
      _
    %v77 = vld [vmem:[%s0] sm:$0xff]
    %v78 = vld [vmem:[%s0 + $0x8] sm:$0xff]
    %v79 = vld [vmem:[%s1] sm:$0xff]
    %v80 = vld [vmem:[%s1 + $0x8] sm:$0xff]
    %v81 = vpack.c.bf16 %v78, %v77
    %v82 = vld [vmem:[%s2] sm:$0xf]
    %v83 = vld [vmem:[%s2 + $0x4] sm:$0xf]
    %v84 = vld [vmem:[%s2 + $0x8] sm:$0xf]
    %v85 = vld [vmem:[%s2 + $0xc] sm:$0xf]
    %v86 = vld [vmem:[%s3] sm:$0x1]
    %v88 = vlaneseq
    %v89 = vshrl.u32 %v88, 7
    %v90 = vsub.s32 0, %v89
    %v91 = vrot.slane %v86, %v90
    %v97 = vunpack.c.l.b16 %v82
    %v98 = vunpack.c.l.b16 %v83
    %v99 = vunpack.c.l.b16 %v84
    %v100 = vunpack.c.l.b16 %v85
    %v101 = vpack.c.b16 %v98, %v97
    %v102 = vpack.c.b16 %v100, %v99
    %vm105 = vcmask 261120
    %v107 = vsel %vm105, %v81, 0
    %109 = vmatprep.subr.bf16.mxu0 0
    %110 = vmatpush1.bf16.msra.mxu0 0
    %111 = vmatprep.subr.bf16.mxu0 0
    %112 = vmatpush1.bf16.msra.mxu0 0
    %113 = vmatprep.subr.bf16.mxu0 0
    %114 = vmatpush1.bf16.msra.mxu0 0
    %115 = vmatprep.subr.bf16.mxu0 0
    %116 = vmatpush1.bf16.msra.mxu0 0
    %117 = vmatprep.subr.bf16.mxu0 0
    %118 = vmatpush1.bf16.msra.mxu0 0
    %119 = vmatprep.subr.bf16.mxu0 0
    %120 = vmatpush1.bf16.msra.mxu0 0
    %121 = vmatprep.subr.bf16.mxu0 0
    %122 = vmatpush1.bf16.msra.mxu0 %v102
    %123 = vmatprep.subr.bf16.mxu0 0
    %124 = vmatpush1.bf16.msra.mxu0 %v101
    %125 = vmatprep.subr.bf16.mxu0 0
    %126 = vmatpush2.bf16.msra.mxu0 0
    %127 = vmatprep.subr.bf16.mxu0 0
    %128 = vmatpush2.bf16.msra.mxu0 0
    %129 = vmatprep.subr.bf16.mxu0 0
    %130 = vmatpush2.bf16.msra.mxu0 0
    %131 = vmatprep.subr.bf16.mxu0 0
    %132 = vmatpush2.bf16.msra.mxu0 0
    %133 = vmatprep.subr.bf16.mxu0 0
    %134 = vmatpush2.bf16.msra.mxu0 0
    %135 = vmatprep.subr.bf16.mxu0 0
    %136 = vmatpush2.bf16.msra.mxu0 0
    %137 = vmatprep.subr.bf16.mxu0 0
    %138 = vmatpush2.bf16.msra.mxu0 0
    %139 = vmatprep.subr.bf16.mxu0 0
    %140 = vmatpush2.bf16.msra.mxu0 0
    %141 = vmatprep.mubr.bf16.mxu0 0
    %142 = vmatmul.mubr.bf16.gmra.mxu0 %v107
    %v143 = vpop.f32.mrf.mxu0
    %v144 = vadd.f32 %v91, %v143
    %v145 = vpop.f32.mrf.mxu0
    %v146 = vpop.f32.mrf.mxu0
    %v147 = vadd.f32 %v91, %v146
    %v148 = vpop.f32.mrf.mxu0
    %149 = vdwg.mxu0
    %v150 = vpack.c.bf16 %v147, %v144
    %152 = vrot.lane.b32.xlu0 %v150, 96
    %v153 = vpop.permute.xlu0 %152
    %vm154 = vcmask 64512
    %v156 = vsel %vm154, %v150, 0
    %v159 = vsel %vm154, %v153, 0
    %161 = vmatprep.subr.bf16.mxu0 0
    %162 = vmatpush1.bf16.xpose.msra.mxu0 0
    %163 = vmatprep.subr.bf16.mxu0 0
    %164 = vmatpush1.bf16.xpose.msra.mxu0 0
    %165 = vmatprep.subr.bf16.mxu0 0
    %166 = vmatpush1.bf16.xpose.msra.mxu0 0
    %167 = vmatprep.subr.bf16.mxu0 0
    %168 = vmatpush1.bf16.xpose.msra.mxu0 0
    %169 = vmatprep.subr.bf16.mxu0 0
    %170 = vmatpush1.bf16.xpose.msra.mxu0 0
    %171 = vmatprep.subr.bf16.mxu0 0
    %172 = vmatpush1.bf16.xpose.msra.mxu0 0
    %173 = vmatprep.subr.bf16.mxu0 0
    %174 = vmatpush1.bf16.xpose.msra.mxu0 0
    %175 = vmatprep.subr.bf16.mxu0 0
    %176 = vmatpush1.bf16.xpose.msra.mxu0 %v159
    %177 = vmatprep.subr.bf16.mxu0 0
    %178 = vmatpush2.bf16.xpose.msra.mxu0 0
    %179 = vmatprep.subr.bf16.mxu0 0
    %180 = vmatpush2.bf16.xpose.msra.mxu0 0
    %181 = vmatprep.subr.bf16.mxu0 0
    %182 = vmatpush2.bf16.xpose.msra.mxu0 0
    %183 = vmatprep.subr.bf16.mxu0 0
    %184 = vmatpush2.bf16.xpose.msra.mxu0 0
    %185 = vmatprep.subr.bf16.mxu0 0
    %186 = vmatpush2.bf16.xpose.msra.mxu0 0
    %187 = vmatprep.subr.bf16.mxu0 0
    %188 = vmatpush2.bf16.xpose.msra.mxu0 0
    %189 = vmatprep.subr.bf16.mxu0 0
    %190 = vmatpush2.bf16.xpose.msra.mxu0 0
    %191 = vmatprep.subr.bf16.mxu0 0
    %192 = vmatpush2.bf16.xpose.msra.mxu0 0
    %193 = vmatprep.mubr.bf16.mxu0 0
    %194 = vmatmul.mubr.bf16.gmra.mxu0 %v156
    %v195 = vpop.f32.mrf.mxu0
    %v196 = vadd.f32 %v79, %v195
    %v197 = vpop.f32.mrf.mxu0
    %v198 = vpop.f32.mrf.mxu0
    %v199 = vadd.f32 %v80, %v198
    %v200 = vpop.f32.mrf.mxu0
    %201 = vdwg.mxu0
    %vm202 = vcmask 130048
    %v203 = vsel %vm202, %v196, -inf
    %204 = vmax.xlane.f32.xlu0 %v203
    %v205 = vpop.xlane.xlu0 %204
    %v206 = vsel %vm202, %v199, -inf
    %207 = vmax.xlane.f32.xlu0 %v206
    %v208 = vpop.xlane.xlu0 %207
    %v209 = vsub.f32 %v196, %v205
    %v210 = vsub.f32 %v199, %v208
    %v211 = vmul.f32 %v209, 1.442695
    %v212 = vpow.pop %v211
    %v213 = vmul.f32 %v210, 1.442695
    %v214 = vpow.pop %v213
    %v215 = vsel %vm202, %v212, 0.0
    %216 = vadd.xlane.f32.xlu0 %v215
    %v217 = vpop.xlane.xlu0 %216
    %v218 = vsel %vm202, %v214, 0.0
    %219 = vadd.xlane.f32.xlu0 %v218
    %v220 = vpop.xlane.xlu0 %219
    %v221 = vrcp.pop %v217
    %v222 = vrcp.pop %v220
    %v223 = vmul.f32 %v212, %v221
    %v224 = vmul.f32 %v214, %v222
    %v225 = vpack.c.bf16 %v224, %v223
    %226 = vrot.lane.b32.xlu0 %v150, 64
    %v227 = vpop.permute.xlu0 %226
    %v230 = vsel %vm202, %v225, 0
    %232 = vmatprep.subr.bf16.mxu0 0
    %233 = vmatpush1.bf16.msra.mxu0 0
    %234 = vmatprep.subr.bf16.mxu0 0
    %235 = vmatpush1.bf16.msra.mxu0 0
    %236 = vmatprep.subr.bf16.mxu0 0
    %237 = vmatpush1.bf16.msra.mxu0 0
    %238 = vmatprep.subr.bf16.mxu0 0
    %239 = vmatpush1.bf16.msra.mxu0 0
    %240 = vmatprep.subr.bf16.mxu0 0
    %241 = vmatpush1.bf16.msra.mxu0 0
    %242 = vmatprep.subr.bf16.mxu0 0
    %243 = vmatpush1.bf16.msra.mxu0 0
    %244 = vmatprep.subr.bf16.mxu0 0
    %245 = vmatpush1.bf16.msra.mxu0 0
    %246 = vmatprep.subr.bf16.mxu0 0
    %247 = vmatpush1.bf16.msra.mxu0 %v227
    %248 = vmatprep.subr.bf16.mxu0 0
    %249 = vmatpush2.bf16.msra.mxu0 0
    %250 = vmatprep.subr.bf16.mxu0 0
    %251 = vmatpush2.bf16.msra.mxu0 0
    %252 = vmatprep.subr.bf16.mxu0 0
    %253 = vmatpush2.bf16.msra.mxu0 0
    %254 = vmatprep.subr.bf16.mxu0 0
    %255 = vmatpush2.bf16.msra.mxu0 0
    %256 = vmatprep.subr.bf16.mxu0 0
    %257 = vmatpush2.bf16.msra.mxu0 0
    %258 = vmatprep.subr.bf16.mxu0 0
    %259 = vmatpush2.bf16.msra.mxu0 0
    %260 = vmatprep.subr.bf16.mxu0 0
    %261 = vmatpush2.bf16.msra.mxu0 0
    %262 = vmatprep.subr.bf16.mxu0 0
    %263 = vmatpush2.bf16.msra.mxu0 0
    %264 = vmatprep.mubr.bf16.mxu0 0
    %265 = vmatmul.mubr.bf16.gmra.mxu0 %v230
    %v266 = vpop.f32.mrf.mxu0
    %v267 = vadd.f32 0.0, %v266
    %v268 = vpop.f32.mrf.mxu0
    %v269 = vpop.f32.mrf.mxu0
    %v270 = vadd.f32 0.0, %v269
    %v271 = vpop.f32.mrf.mxu0
    %272 = vdwg.mxu0
    %273 = vrot.lane.b32.xlu0 %v150, 120
    %v274 = vpop.permute.xlu0 %273
    %275 = vrot.lane.b32.xlu0 %v150, 88
    %v276 = vpop.permute.xlu0 %275
    %v278 = vsel %vm154, %v274, 0
    %v281 = vsel %vm154, %v276, 0
    %283 = vmatprep.subr.bf16.mxu0 0
    %284 = vmatpush1.bf16.xpose.msra.mxu0 0
    %285 = vmatprep.subr.bf16.mxu0 0
    %286 = vmatpush1.bf16.xpose.msra.mxu0 0
    %287 = vmatprep.subr.bf16.mxu0 0
    %288 = vmatpush1.bf16.xpose.msra.mxu0 0
    %289 = vmatprep.subr.bf16.mxu0 0
    %290 = vmatpush1.bf16.xpose.msra.mxu0 0
    %291 = vmatprep.subr.bf16.mxu0 0
    %292 = vmatpush1.bf16.xpose.msra.mxu0 0
    %293 = vmatprep.subr.bf16.mxu0 0
    %294 = vmatpush1.bf16.xpose.msra.mxu0 0
    %295 = vmatprep.subr.bf16.mxu0 0
    %296 = vmatpush1.bf16.xpose.msra.mxu0 0
    %297 = vmatprep.subr.bf16.mxu0 0
    %298 = vmatpush1.bf16.xpose.msra.mxu0 %v281
    %299 = vmatprep.subr.bf16.mxu0 0
    %300 = vmatpush2.bf16.xpose.msra.mxu0 0
    %301 = vmatprep.subr.bf16.mxu0 0
    %302 = vmatpush2.bf16.xpose.msra.mxu0 0
    %303 = vmatprep.subr.bf16.mxu0 0
    %304 = vmatpush2.bf16.xpose.msra.mxu0 0
    %305 = vmatprep.subr.bf16.mxu0 0
    %306 = vmatpush2.bf16.xpose.msra.mxu0 0
    %307 = vmatprep.subr.bf16.mxu0 0
    %308 = vmatpush2.bf16.xpose.msra.mxu0 0
    %309 = vmatprep.subr.bf16.mxu0 0
    %310 = vmatpush2.bf16.xpose.msra.mxu0 0
    %311 = vmatprep.subr.bf16.mxu0 0
    %312 = vmatpush2.bf16.xpose.msra.mxu0 0
    %313 = vmatprep.subr.bf16.mxu0 0
    %314 = vmatpush2.bf16.xpose.msra.mxu0 0
    %315 = vmatprep.mubr.bf16.mxu0 0
    %316 = vmatmul.mubr.bf16.gmra.mxu0 %v278
    %v317 = vpop.f32.mrf.mxu0
    %v318 = vadd.f32 %v79, %v317
    %v319 = vpop.f32.mrf.mxu0
    %v320 = vpop.f32.mrf.mxu0
    %v321 = vadd.f32 %v80, %v320
    %v322 = vpop.f32.mrf.mxu0
    %323 = vdwg.mxu0
    %v324 = vsel %vm202, %v318, -inf
    %325 = vmax.xlane.f32.xlu0 %v324
    %v326 = vpop.xlane.xlu0 %325
    %v327 = vsel %vm202, %v321, -inf
    %328 = vmax.xlane.f32.xlu0 %v327
    %v329 = vpop.xlane.xlu0 %328
    %v330 = vsub.f32 %v318, %v326
    %v331 = vsub.f32 %v321, %v329
    %v332 = vmul.f32 %v330, 1.442695
    %v333 = vpow.pop %v332
    %v334 = vmul.f32 %v331, 1.442695
    %v335 = vpow.pop %v334
    %v336 = vsel %vm202, %v333, 0.0
    %337 = vadd.xlane.f32.xlu0 %v336
    %v338 = vpop.xlane.xlu0 %337
    %v339 = vsel %vm202, %v335, 0.0
    %340 = vadd.xlane.f32.xlu0 %v339
    %v341 = vpop.xlane.xlu0 %340
    %v342 = vrcp.pop %v338
    %v343 = vrcp.pop %v341
    %v344 = vmul.f32 %v333, %v342
    %v345 = vmul.f32 %v335, %v343
    %v346 = vpack.c.bf16 %v345, %v344
    %347 = vrot.lane.b32.xlu0 %v150, 56
    %v348 = vpop.permute.xlu0 %347
    %v351 = vsel %vm202, %v346, 0
    %353 = vmatprep.subr.bf16.mxu0 0
    %354 = vmatpush1.bf16.msra.mxu0 0
    %355 = vmatprep.subr.bf16.mxu0 0
    %356 = vmatpush1.bf16.msra.mxu0 0
    %357 = vmatprep.subr.bf16.mxu0 0
    %358 = vmatpush1.bf16.msra.mxu0 0
    %359 = vmatprep.subr.bf16.mxu0 0
    %360 = vmatpush1.bf16.msra.mxu0 0
    %361 = vmatprep.subr.bf16.mxu0 0
    %362 = vmatpush1.bf16.msra.mxu0 0
    %363 = vmatprep.subr.bf16.mxu0 0
    %364 = vmatpush1.bf16.msra.mxu0 0
    %365 = vmatprep.subr.bf16.mxu0 0
    %366 = vmatpush1.bf16.msra.mxu0 0
    %367 = vmatprep.subr.bf16.mxu0 0
    %368 = vmatpush1.bf16.msra.mxu0 %v348
    %369 = vmatprep.subr.bf16.mxu0 0
    %370 = vmatpush2.bf16.msra.mxu0 0
    %371 = vmatprep.subr.bf16.mxu0 0
    %372 = vmatpush2.bf16.msra.mxu0 0
    %373 = vmatprep.subr.bf16.mxu0 0
    %374 = vmatpush2.bf16.msra.mxu0 0
    %375 = vmatprep.subr.bf16.mxu0 0
    %376 = vmatpush2.bf16.msra.mxu0 0
    %377 = vmatprep.subr.bf16.mxu0 0
    %378 = vmatpush2.bf16.msra.mxu0 0
    %379 = vmatprep.subr.bf16.mxu0 0
    %380 = vmatpush2.bf16.msra.mxu0 0
    %381 = vmatprep.subr.bf16.mxu0 0
    %382 = vmatpush2.bf16.msra.mxu0 0
    %383 = vmatprep.subr.bf16.mxu0 0
    %384 = vmatpush2.bf16.msra.mxu0 0
    %385 = vmatprep.mubr.bf16.mxu0 0
    %386 = vmatmul.mubr.bf16.gmra.mxu0 %v351
    %v387 = vpop.f32.mrf.mxu0
    %v388 = vadd.f32 0.0, %v387
    %v389 = vpop.f32.mrf.mxu0
    %v390 = vpop.f32.mrf.mxu0
    %v391 = vadd.f32 0.0, %v390
    %v392 = vpop.f32.mrf.mxu0
    %393 = vdwg.mxu0
    %394 = vrot.lane.b32.xlu0 %v150, 112
    %v395 = vpop.permute.xlu0 %394
    %396 = vrot.lane.b32.xlu0 %v150, 80
    %v397 = vpop.permute.xlu0 %396
    %v399 = vsel %vm154, %v395, 0
    %v402 = vsel %vm154, %v397, 0
    %404 = vmatprep.subr.bf16.mxu0 0
    %405 = vmatpush1.bf16.xpose.msra.mxu0 0
    %406 = vmatprep.subr.bf16.mxu0 0
    %407 = vmatpush1.bf16.xpose.msra.mxu0 0
    %408 = vmatprep.subr.bf16.mxu0 0
    %409 = vmatpush1.bf16.xpose.msra.mxu0 0
    %410 = vmatprep.subr.bf16.mxu0 0
    %411 = vmatpush1.bf16.xpose.msra.mxu0 0
    %412 = vmatprep.subr.bf16.mxu0 0
    %413 = vmatpush1.bf16.xpose.msra.mxu0 0
    %414 = vmatprep.subr.bf16.mxu0 0
    %415 = vmatpush1.bf16.xpose.msra.mxu0 0
    %416 = vmatprep.subr.bf16.mxu0 0
    %417 = vmatpush1.bf16.xpose.msra.mxu0 0
    %418 = vmatprep.subr.bf16.mxu0 0
    %419 = vmatpush1.bf16.xpose.msra.mxu0 %v402
    %420 = vmatprep.subr.bf16.mxu0 0
    %421 = vmatpush2.bf16.xpose.msra.mxu0 0
    %422 = vmatprep.subr.bf16.mxu0 0
    %423 = vmatpush2.bf16.xpose.msra.mxu0 0
    %424 = vmatprep.subr.bf16.mxu0 0
    %425 = vmatpush2.bf16.xpose.msra.mxu0 0
    %426 = vmatprep.subr.bf16.mxu0 0
    %427 = vmatpush2.bf16.xpose.msra.mxu0 0
    %428 = vmatprep.subr.bf16.mxu0 0
    %429 = vmatpush2.bf16.xpose.msra.mxu0 0
    %430 = vmatprep.subr.bf16.mxu0 0
    %431 = vmatpush2.bf16.xpose.msra.mxu0 0
    %432 = vmatprep.subr.bf16.mxu0 0
    %433 = vmatpush2.bf16.xpose.msra.mxu0 0
    %434 = vmatprep.subr.bf16.mxu0 0
    %435 = vmatpush2.bf16.xpose.msra.mxu0 0
    %436 = vmatprep.mubr.bf16.mxu0 0
    %437 = vmatmul.mubr.bf16.gmra.mxu0 %v399
    %v438 = vpop.f32.mrf.mxu0
    %v439 = vadd.f32 %v79, %v438
    %v440 = vpop.f32.mrf.mxu0
    %v441 = vpop.f32.mrf.mxu0
    %v442 = vadd.f32 %v80, %v441
    %v443 = vpop.f32.mrf.mxu0
    %444 = vdwg.mxu0
    %v445 = vsel %vm202, %v439, -inf
    %446 = vmax.xlane.f32.xlu0 %v445
    %v447 = vpop.xlane.xlu0 %446
    %v448 = vsel %vm202, %v442, -inf
    %449 = vmax.xlane.f32.xlu0 %v448
    %v450 = vpop.xlane.xlu0 %449
    %v451 = vsub.f32 %v439, %v447
    %v452 = vsub.f32 %v442, %v450
    %v453 = vmul.f32 %v451, 1.442695
    %v454 = vpow.pop %v453
    %v455 = vmul.f32 %v452, 1.442695
    %v456 = vpow.pop %v455
    %v457 = vsel %vm202, %v454, 0.0
    %458 = vadd.xlane.f32.xlu0 %v457
    %v459 = vpop.xlane.xlu0 %458
    %v460 = vsel %vm202, %v456, 0.0
    %461 = vadd.xlane.f32.xlu0 %v460
    %v462 = vpop.xlane.xlu0 %461
    %v463 = vrcp.pop %v459
    %v464 = vrcp.pop %v462
    %v465 = vmul.f32 %v454, %v463
    %v466 = vmul.f32 %v456, %v464
    %v467 = vpack.c.bf16 %v466, %v465
    %468 = vrot.lane.b32.xlu0 %v150, 48
    %v469 = vpop.permute.xlu0 %468
    %v472 = vsel %vm202, %v467, 0
    %474 = vmatprep.subr.bf16.mxu0 0
    %475 = vmatpush1.bf16.msra.mxu0 0
    %476 = vmatprep.subr.bf16.mxu0 0
    %477 = vmatpush1.bf16.msra.mxu0 0
    %478 = vmatprep.subr.bf16.mxu0 0
    %479 = vmatpush1.bf16.msra.mxu0 0
    %480 = vmatprep.subr.bf16.mxu0 0
    %481 = vmatpush1.bf16.msra.mxu0 0
    %482 = vmatprep.subr.bf16.mxu0 0
    %483 = vmatpush1.bf16.msra.mxu0 0
    %484 = vmatprep.subr.bf16.mxu0 0
    %485 = vmatpush1.bf16.msra.mxu0 0
    %486 = vmatprep.subr.bf16.mxu0 0
    %487 = vmatpush1.bf16.msra.mxu0 0
    %488 = vmatprep.subr.bf16.mxu0 0
    %489 = vmatpush1.bf16.msra.mxu0 %v469
    %490 = vmatprep.subr.bf16.mxu0 0
    %491 = vmatpush2.bf16.msra.mxu0 0
    %492 = vmatprep.subr.bf16.mxu0 0
    %493 = vmatpush2.bf16.msra.mxu0 0
    %494 = vmatprep.subr.bf16.mxu0 0
    %495 = vmatpush2.bf16.msra.mxu0 0
    %496 = vmatprep.subr.bf16.mxu0 0
    %497 = vmatpush2.bf16.msra.mxu0 0
    %498 = vmatprep.subr.bf16.mxu0 0
    %499 = vmatpush2.bf16.msra.mxu0 0
    %500 = vmatprep.subr.bf16.mxu0 0
    %501 = vmatpush2.bf16.msra.mxu0 0
    %502 = vmatprep.subr.bf16.mxu0 0
    %503 = vmatpush2.bf16.msra.mxu0 0
    %504 = vmatprep.subr.bf16.mxu0 0
    %505 = vmatpush2.bf16.msra.mxu0 0
    %506 = vmatprep.mubr.bf16.mxu0 0
    %507 = vmatmul.mubr.bf16.gmra.mxu0 %v472
    %v508 = vpop.f32.mrf.mxu0
    %v509 = vadd.f32 0.0, %v508
    %v510 = vpop.f32.mrf.mxu0
    %v511 = vpop.f32.mrf.mxu0
    %v512 = vadd.f32 0.0, %v511
    %v513 = vpop.f32.mrf.mxu0
    %514 = vdwg.mxu0
    %515 = vrot.lane.b32.xlu0 %v150, 104
    %v516 = vpop.permute.xlu0 %515
    %517 = vrot.lane.b32.xlu0 %v150, 72
    %v518 = vpop.permute.xlu0 %517
    %v520 = vsel %vm154, %v516, 0
    %v523 = vsel %vm154, %v518, 0
    %525 = vmatprep.subr.bf16.mxu0 0
    %526 = vmatpush1.bf16.xpose.msra.mxu0 0
    %527 = vmatprep.subr.bf16.mxu0 0
    %528 = vmatpush1.bf16.xpose.msra.mxu0 0
    %529 = vmatprep.subr.bf16.mxu0 0
    %530 = vmatpush1.bf16.xpose.msra.mxu0 0
    %531 = vmatprep.subr.bf16.mxu0 0
    %532 = vmatpush1.bf16.xpose.msra.mxu0 0
    %533 = vmatprep.subr.bf16.mxu0 0
    %534 = vmatpush1.bf16.xpose.msra.mxu0 0
    %535 = vmatprep.subr.bf16.mxu0 0
    %536 = vmatpush1.bf16.xpose.msra.mxu0 0
    %537 = vmatprep.subr.bf16.mxu0 0
    %538 = vmatpush1.bf16.xpose.msra.mxu0 0
    %539 = vmatprep.subr.bf16.mxu0 0
    %540 = vmatpush1.bf16.xpose.msra.mxu0 %v523
    %541 = vmatprep.subr.bf16.mxu0 0
    %542 = vmatpush2.bf16.xpose.msra.mxu0 0
    %543 = vmatprep.subr.bf16.mxu0 0
    %544 = vmatpush2.bf16.xpose.msra.mxu0 0
    %545 = vmatprep.subr.bf16.mxu0 0
    %546 = vmatpush2.bf16.xpose.msra.mxu0 0
    %547 = vmatprep.subr.bf16.mxu0 0
    %548 = vmatpush2.bf16.xpose.msra.mxu0 0
    %549 = vmatprep.subr.bf16.mxu0 0
    %550 = vmatpush2.bf16.xpose.msra.mxu0 0
    %551 = vmatprep.subr.bf16.mxu0 0
    %552 = vmatpush2.bf16.xpose.msra.mxu0 0
    %553 = vmatprep.subr.bf16.mxu0 0
    %554 = vmatpush2.bf16.xpose.msra.mxu0 0
    %555 = vmatprep.subr.bf16.mxu0 0
    %556 = vmatpush2.bf16.xpose.msra.mxu0 0
    %557 = vmatprep.mubr.bf16.mxu0 0
    %558 = vmatmul.mubr.bf16.gmra.mxu0 %v520
    %v559 = vpop.f32.mrf.mxu0
    %v560 = vadd.f32 %v79, %v559
    %v561 = vpop.f32.mrf.mxu0
    %v562 = vpop.f32.mrf.mxu0
    %v563 = vadd.f32 %v80, %v562
    %v564 = vpop.f32.mrf.mxu0
    %565 = vdwg.mxu0
    %v566 = vsel %vm202, %v560, -inf
    %567 = vmax.xlane.f32.xlu0 %v566
    %v568 = vpop.xlane.xlu0 %567
    %v569 = vsel %vm202, %v563, -inf
    %570 = vmax.xlane.f32.xlu0 %v569
    %v571 = vpop.xlane.xlu0 %570
    %v572 = vsub.f32 %v560, %v568
    %v573 = vsub.f32 %v563, %v571
    %v574 = vmul.f32 %v572, 1.442695
    %v575 = vpow.pop %v574
    %v576 = vmul.f32 %v573, 1.442695
    %v577 = vpow.pop %v576
    %v578 = vsel %vm202, %v575, 0.0
    %579 = vadd.xlane.f32.xlu0 %v578
    %v580 = vpop.xlane.xlu0 %579
    %v581 = vsel %vm202, %v577, 0.0
    %582 = vadd.xlane.f32.xlu0 %v581
    %v583 = vpop.xlane.xlu0 %582
    %v584 = vrcp.pop %v580
    %v585 = vrcp.pop %v583
    %v586 = vmul.f32 %v575, %v584
    %v587 = vmul.f32 %v577, %v585
    %v588 = vpack.c.bf16 %v587, %v586
    %589 = vrot.lane.b32.xlu0 %v150, 40
    %v590 = vpop.permute.xlu0 %589
    %v593 = vsel %vm202, %v588, 0
    %595 = vmatprep.subr.bf16.mxu0 0
    %596 = vmatpush1.bf16.msra.mxu0 0
    %597 = vmatprep.subr.bf16.mxu0 0
    %598 = vmatpush1.bf16.msra.mxu0 0
    %599 = vmatprep.subr.bf16.mxu0 0
    %600 = vmatpush1.bf16.msra.mxu0 0
    %601 = vmatprep.subr.bf16.mxu0 0
    %602 = vmatpush1.bf16.msra.mxu0 0
    %603 = vmatprep.subr.bf16.mxu0 0
    %604 = vmatpush1.bf16.msra.mxu0 0
    %605 = vmatprep.subr.bf16.mxu0 0
    %606 = vmatpush1.bf16.msra.mxu0 0
    %607 = vmatprep.subr.bf16.mxu0 0
    %608 = vmatpush1.bf16.msra.mxu0 0
    %609 = vmatprep.subr.bf16.mxu0 0
    %610 = vmatpush1.bf16.msra.mxu0 %v590
    %611 = vmatprep.subr.bf16.mxu0 0
    %612 = vmatpush2.bf16.msra.mxu0 0
    %613 = vmatprep.subr.bf16.mxu0 0
    %614 = vmatpush2.bf16.msra.mxu0 0
    %615 = vmatprep.subr.bf16.mxu0 0
    %616 = vmatpush2.bf16.msra.mxu0 0
    %617 = vmatprep.subr.bf16.mxu0 0
    %618 = vmatpush2.bf16.msra.mxu0 0
    %619 = vmatprep.subr.bf16.mxu0 0
    %620 = vmatpush2.bf16.msra.mxu0 0
    %621 = vmatprep.subr.bf16.mxu0 0
    %622 = vmatpush2.bf16.msra.mxu0 0
    %623 = vmatprep.subr.bf16.mxu0 0
    %624 = vmatpush2.bf16.msra.mxu0 0
    %625 = vmatprep.subr.bf16.mxu0 0
    %626 = vmatpush2.bf16.msra.mxu0 0
    %627 = vmatprep.mubr.bf16.mxu0 0
    %628 = vmatmul.mubr.bf16.gmra.mxu0 %v593
    %v629 = vpop.f32.mrf.mxu0
    %v630 = vadd.f32 0.0, %v629
    %v631 = vpop.f32.mrf.mxu0
    %v632 = vpop.f32.mrf.mxu0
    %v633 = vadd.f32 0.0, %v632
    %v634 = vpop.f32.mrf.mxu0
    %635 = vdwg.mxu0
    %638 = vrot.lane.b32.xlu0 %v388, 8
    %v639 = vpop.permute.xlu0 %638
    %640 = vrot.lane.b32.xlu0 %v391, 8
    %v641 = vpop.permute.xlu0 %640
    %646 = vrot.lane.b32.xlu0 %v509, 16
    %v647 = vpop.permute.xlu0 %646
    %648 = vrot.lane.b32.xlu0 %v512, 16
    %v649 = vpop.permute.xlu0 %648
    %654 = vrot.lane.b32.xlu0 %v630, 24
    %v655 = vpop.permute.xlu0 %654
    %656 = vrot.lane.b32.xlu0 %v633, 24
    %v657 = vpop.permute.xlu0 %656
    %v660 = vsel %vm154, %v267, %v639
    %v661 = vsel %vm154, %v270, %v641
    %v662 = vsel %vm202, %v660, %v647
    %v663 = vsel %vm202, %v661, %v649
    %vm664 = vcmask 195584
    %v665 = vsel %vm664, %v662, %v655
    %v666 = vsel %vm664, %v663, %v657
    %v667 = vpack.c.bf16 %v666, %v665
    %v668 = vld [vmem:[#allocation2] sm:$0xf]
    %v669 = vld [vmem:[#allocation2 + $0x4] sm:$0xf]
    %v670 = vld [vmem:[#allocation2 + $0x8] sm:$0xf]
    %v671 = vld [vmem:[#allocation2 + $0xc] sm:$0xf]
    %v672 = vld [vmem:[%s5] sm:$0x1]
    %v674 = vlaneseq
    %v675 = vshrl.u32 %v674, 7
    %v676 = vsub.s32 0, %v675
    %v677 = vrot.slane %v672, %v676
    %v683 = vunpack.c.l.b16 %v668
    %v684 = vunpack.c.l.b16 %v669
    %v685 = vunpack.c.l.b16 %v670
    %v686 = vunpack.c.l.b16 %v671
    %v687 = vpack.c.b16 %v684, %v683
    %v688 = vpack.c.b16 %v686, %v685
    %v692 = vsel %vm105, %v667, 0
    %694 = vmatprep.subr.bf16.mxu0 0
    %695 = vmatpush1.bf16.msra.mxu0 0
    %696 = vmatprep.subr.bf16.mxu0 0
    %697 = vmatpush1.bf16.msra.mxu0 0
    %698 = vmatprep.subr.bf16.mxu0 0
    %699 = vmatpush1.bf16.msra.mxu0 0
    %700 = vmatprep.subr.bf16.mxu0 0
    %701 = vmatpush1.bf16.msra.mxu0 0
    %702 = vmatprep.subr.bf16.mxu0 0
    %703 = vmatpush1.bf16.msra.mxu0 0
    %704 = vmatprep.subr.bf16.mxu0 0
    %705 = vmatpush1.bf16.msra.mxu0 0
    %706 = vmatprep.subr.bf16.mxu0 0
    %707 = vmatpush1.bf16.msra.mxu0 %v688
    %708 = vmatprep.subr.bf16.mxu0 0
    %709 = vmatpush1.bf16.msra.mxu0 %v687
    %710 = vmatprep.subr.bf16.mxu0 0
    %711 = vmatpush2.bf16.msra.mxu0 0
    %712 = vmatprep.subr.bf16.mxu0 0
    %713 = vmatpush2.bf16.msra.mxu0 0
    %714 = vmatprep.subr.bf16.mxu0 0
    %715 = vmatpush2.bf16.msra.mxu0 0
    %716 = vmatprep.subr.bf16.mxu0 0
    %717 = vmatpush2.bf16.msra.mxu0 0
    %718 = vmatprep.subr.bf16.mxu0 0
    %719 = vmatpush2.bf16.msra.mxu0 0
    %720 = vmatprep.subr.bf16.mxu0 0
    %721 = vmatpush2.bf16.msra.mxu0 0
    %722 = vmatprep.subr.bf16.mxu0 0
    %723 = vmatpush2.bf16.msra.mxu0 0
    %724 = vmatprep.subr.bf16.mxu0 0
    %725 = vmatpush2.bf16.msra.mxu0 0
    %726 = vmatprep.mubr.bf16.mxu0 0
    %727 = vmatmul.mubr.bf16.gmra.mxu0 %v692
    %v728 = vpop.f32.mrf.mxu0
    %v729 = vadd.f32 %v677, %v728
    %v730 = vpop.f32.mrf.mxu0
    %v731 = vpop.f32.mrf.mxu0
    %v732 = vadd.f32 %v677, %v731
    %v733 = vpop.f32.mrf.mxu0
    %734 = vdwg.mxu0
    %v735 = vadd.f32 %v77, %v729
    %v736 = vadd.f32 %v78, %v732
    %v737 = vld [vmem:[%s10] sm:$0x1]
    %v738 = vld [vmem:[%s11] sm:$0x1]
    %v739 = vsel %vm105, %v735, 0.0
    %740 = vadd.xlane.f32.xlu0 %v739
    %v741 = vpop.xlane.xlu0 %740
    %v742 = vsel %vm105, %v736, 0.0
    %743 = vadd.xlane.f32.xlu0 %v742
    %v744 = vpop.xlane.xlu0 %743
    %v745 = vrcp.pop 32.0
    %v746 = vmul.f32 %v741, %v745
    %v747 = vmul.f32 %v744, %v745
    %v748 = vsub.f32 %v735, %v746
    %v749 = vsub.f32 %v736, %v747
    %v750 = vmul.f32 %v748, %v748
    %v751 = vmul.f32 %v749, %v749
    %v752 = vsel %vm105, %v750, 0.0
    %753 = vadd.xlane.f32.xlu0 %v752
    %v754 = vpop.xlane.xlu0 %753
    %v755 = vsel %vm105, %v751, 0.0
    %756 = vadd.xlane.f32.xlu0 %v755
    %v757 = vpop.xlane.xlu0 %756
    %v758 = vmul.f32 %v754, %v745
    %v759 = vmul.f32 %v757, %v745
    %v760 = vadd.f32 %v758, 1e-05
    %v761 = vadd.f32 %v759, 1e-05
    %v762 = vrsqrt.pop %v760
    %v763 = vrsqrt.pop %v761
    %v764 = vmul.f32 %v748, %v762
    %v765 = vmul.f32 %v749, %v763
    %v767 = vlaneseq
    %v768 = vshrl.u32 %v767, 7
    %v769 = vsub.s32 0, %v768
    %v770 = vrot.slane %v737, %v769
    %v772 = vmul.f32 %v764, %v770
    %v773 = vmul.f32 %v765, %v770
    %v775 = vlaneseq
    %v776 = vshrl.u32 %v775, 7
    %v777 = vsub.s32 0, %v776
    %v778 = vrot.slane %v738, %v777
    %v780 = vadd.f32 %v772, %v778
    %v781 = vadd.f32 %v773, %v778
    %v782 = vpack.c.bf16 %v781, %v780
    %v783 = vld [vmem:[#allocation5] sm:$0xf]
    %v784 = vld [vmem:[#allocation5 + $0x4] sm:$0xf]
    %v785 = vld [vmem:[#allocation5 + $0x8] sm:$0xf]
    %v786 = vld [vmem:[#allocation5 + $0xc] sm:$0xf]
    %v787 = vld [vmem:[%s7] sm:$0x1]
    %v789 = vlaneseq
    %v790 = vshrl.u32 %v789, 7
    %v791 = vsub.s32 0, %v790
    %v792 = vrot.slane %v787, %v791
    %v798 = vunpack.c.l.b16 %v783
    %v799 = vunpack.c.l.b16 %v784
    %v800 = vunpack.c.l.b16 %v785
    %v801 = vunpack.c.l.b16 %v786
    %v802 = vpack.c.b16 %v799, %v798
    %v803 = vpack.c.b16 %v801, %v800
    %v807 = vsel %vm105, %v782, 0
    %809 = vmatprep.subr.bf16.mxu0 0
    %810 = vmatpush1.bf16.msra.mxu0 0
    %811 = vmatprep.subr.bf16.mxu0 0
    %812 = vmatpush1.bf16.msra.mxu0 0
    %813 = vmatprep.subr.bf16.mxu0 0
    %814 = vmatpush1.bf16.msra.mxu0 0
    %815 = vmatprep.subr.bf16.mxu0 0
    %816 = vmatpush1.bf16.msra.mxu0 0
    %817 = vmatprep.subr.bf16.mxu0 0
    %818 = vmatpush1.bf16.msra.mxu0 0
    %819 = vmatprep.subr.bf16.mxu0 0
    %820 = vmatpush1.bf16.msra.mxu0 0
    %821 = vmatprep.subr.bf16.mxu0 0
    %822 = vmatpush1.bf16.msra.mxu0 %v803
    %823 = vmatprep.subr.bf16.mxu0 0
    %824 = vmatpush1.bf16.msra.mxu0 %v802
    %825 = vmatprep.subr.bf16.mxu0 0
    %826 = vmatpush2.bf16.msra.mxu0 0
    %827 = vmatprep.subr.bf16.mxu0 0
    %828 = vmatpush2.bf16.msra.mxu0 0
    %829 = vmatprep.subr.bf16.mxu0 0
    %830 = vmatpush2.bf16.msra.mxu0 0
    %831 = vmatprep.subr.bf16.mxu0 0
    %832 = vmatpush2.bf16.msra.mxu0 0
    %833 = vmatprep.subr.bf16.mxu0 0
    %834 = vmatpush2.bf16.msra.mxu0 0
    %835 = vmatprep.subr.bf16.mxu0 0
    %836 = vmatpush2.bf16.msra.mxu0 0
    %837 = vmatprep.subr.bf16.mxu0 0
    %838 = vmatpush2.bf16.msra.mxu0 0
    %839 = vmatprep.subr.bf16.mxu0 0
    %840 = vmatpush2.bf16.msra.mxu0 0
    %841 = vmatprep.mubr.bf16.mxu0 0
    %842 = vmatmul.mubr.bf16.gmra.mxu0 %v807
    %v843 = vpop.f32.mrf.mxu0
    %v844 = vadd.f32 %v792, %v843
    %v845 = vpop.f32.mrf.mxu0
    %v846 = vpop.f32.mrf.mxu0
    %v847 = vadd.f32 %v792, %v846
    %v848 = vpop.f32.mrf.mxu0
    %849 = vdwg.mxu0
    %v850 = vmax.f32 %v844, 0.0
    %v851 = vmax.f32 %v847, 0.0
    %v852 = vpack.c.bf16 %v851, %v850
    %v853 = vld [vmem:[%s8] sm:$0xf]
    %v854 = vld [vmem:[%s8 + $0x4] sm:$0xf]
    %v855 = vld [vmem:[%s8 + $0x8] sm:$0xf]
    %v856 = vld [vmem:[%s8 + $0xc] sm:$0xf]
    %v857 = vld [vmem:[%s8 + $0x10] sm:$0xf]
    %v858 = vld [vmem:[%s8 + $0x14] sm:$0xf]
    %v859 = vld [vmem:[%s8 + $0x18] sm:$0xf]
    %v860 = vld [vmem:[%s8 + $0x1c] sm:$0xf]
    %v861 = vld [vmem:[%s9] sm:$0x1]
    %v863 = vlaneseq
    %v864 = vshrl.u32 %v863, 7
    %v865 = vsub.s32 0, %v864
    %v866 = vrot.slane %v861, %v865
    %v876 = vunpack.c.l.b16 %v853
    %v877 = vunpack.c.l.b16 %v854
    %v878 = vunpack.c.l.b16 %v855
    %v879 = vunpack.c.l.b16 %v856
    %v880 = vunpack.c.l.b16 %v857
    %v881 = vunpack.c.l.b16 %v858
    %v882 = vunpack.c.l.b16 %v859
    %v883 = vunpack.c.l.b16 %v860
    %v884 = vpack.c.b16 %v877, %v876
    %v885 = vpack.c.b16 %v879, %v878
    %v886 = vpack.c.b16 %v881, %v880
    %v887 = vpack.c.b16 %v883, %v882
    %vm892 = vcmask 523264
    %v894 = vsel %vm892, %v852, 0
    %896 = vmatprep.subr.bf16.mxu0 0
    %897 = vmatpush1.bf16.msra.mxu0 0
    %898 = vmatprep.subr.bf16.mxu0 0
    %899 = vmatpush1.bf16.msra.mxu0 0
    %900 = vmatprep.subr.bf16.mxu0 0
    %901 = vmatpush1.bf16.msra.mxu0 0
    %902 = vmatprep.subr.bf16.mxu0 0
    %903 = vmatpush1.bf16.msra.mxu0 0
    %904 = vmatprep.subr.bf16.mxu0 0
    %905 = vmatpush1.bf16.msra.mxu0 %v887
    %906 = vmatprep.subr.bf16.mxu0 0
    %907 = vmatpush1.bf16.msra.mxu0 %v886
    %908 = vmatprep.subr.bf16.mxu0 0
    %909 = vmatpush1.bf16.msra.mxu0 %v885
    %910 = vmatprep.subr.bf16.mxu0 0
    %911 = vmatpush1.bf16.msra.mxu0 %v884
    %912 = vmatprep.subr.bf16.mxu0 0
    %913 = vmatpush2.bf16.msra.mxu0 0
    %914 = vmatprep.subr.bf16.mxu0 0
    %915 = vmatpush2.bf16.msra.mxu0 0
    %916 = vmatprep.subr.bf16.mxu0 0
    %917 = vmatpush2.bf16.msra.mxu0 0
    %918 = vmatprep.subr.bf16.mxu0 0
    %919 = vmatpush2.bf16.msra.mxu0 0
    %920 = vmatprep.subr.bf16.mxu0 0
    %921 = vmatpush2.bf16.msra.mxu0 0
    %922 = vmatprep.subr.bf16.mxu0 0
    %923 = vmatpush2.bf16.msra.mxu0 0
    %924 = vmatprep.subr.bf16.mxu0 0
    %925 = vmatpush2.bf16.msra.mxu0 0
    %926 = vmatprep.subr.bf16.mxu0 0
    %927 = vmatpush2.bf16.msra.mxu0 0
    %928 = vmatprep.mubr.bf16.mxu0 0
    %929 = vmatmul.mubr.bf16.gmra.mxu0 %v894
    %v930 = vpop.f32.mrf.mxu0
    %v931 = vadd.f32 %v866, %v930
    %v932 = vpop.f32.mrf.mxu0
    %v933 = vpop.f32.mrf.mxu0
    %v934 = vadd.f32 %v866, %v933
    %v935 = vpop.f32.mrf.mxu0
    %936 = vdwg.mxu0
    %v937 = vadd.f32 %v780, %v931
    %v938 = vadd.f32 %v781, %v934
    %v939 = vld [vmem:[%s12] sm:$0x1]
    %v940 = vld [vmem:[%s13] sm:$0x1]
    %v941 = vsel %vm105, %v937, 0.0
    %942 = vadd.xlane.f32.xlu0 %v941
    %v943 = vpop.xlane.xlu0 %942
    %v944 = vsel %vm105, %v938, 0.0
    %945 = vadd.xlane.f32.xlu0 %v944
    %v946 = vpop.xlane.xlu0 %945
    %v947 = vmul.f32 %v943, %v745
    %v948 = vmul.f32 %v946, %v745
    %v949 = vsub.f32 %v937, %v947
    %v950 = vsub.f32 %v938, %v948
    %v951 = vmul.f32 %v949, %v949
    %v952 = vmul.f32 %v950, %v950
    %v953 = vsel %vm105, %v951, 0.0
    %954 = vadd.xlane.f32.xlu0 %v953
    %v955 = vpop.xlane.xlu0 %954
    %v956 = vsel %vm105, %v952, 0.0
    %957 = vadd.xlane.f32.xlu0 %v956
    %v958 = vpop.xlane.xlu0 %957
    %v959 = vmul.f32 %v955, %v745
    %v960 = vmul.f32 %v958, %v745
    %v961 = vadd.f32 %v959, 1e-05
    %v962 = vadd.f32 %v960, 1e-05
    %v963 = vrsqrt.pop %v961
    %v964 = vrsqrt.pop %v962
    %v965 = vmul.f32 %v949, %v963
    %v966 = vmul.f32 %v950, %v964
    %v968 = vlaneseq
    %v969 = vshrl.u32 %v968, 7
    %v970 = vsub.s32 0, %v969
    %v971 = vrot.slane %v939, %v970
    %v973 = vmul.f32 %v965, %v971
    %v974 = vmul.f32 %v966, %v971
    %v976 = vlaneseq
    %v977 = vshrl.u32 %v976, 7
    %v978 = vsub.s32 0, %v977
    %v979 = vrot.slane %v940, %v978
    %v981 = vadd.f32 %v973, %v979
    %v982 = vadd.f32 %v974, %v979
    %983 = vst.msk [vmem:[#allocation7] sm:$0xff] %vm105, %v981
    %984 = vst.msk [vmem:[#allocation7 + $0x8] sm:$0xff] %vm105, %v982
    // Predicated region
    $region66: #{tpu_custom_call.1} parent=1 // pred_check
      _
    $region67: #{tpu_custom_call.1} parent=1 // pred_check_branch
      %986 = sbr.rel (0) target = $region69
    $region68: #{tpu_custom_call.1} parent=1 // pred_region
      %s988 = ssub.s32 256, 256
      %989 = vsyncadd [#allocation4], %s988
      %s990 = sshll.u32 [#allocation7], 4
      %s991 = int_to_ptr.vmem [resolvable:$true] %s990
      %996 = dma.vmem_to_hbm [thread:$0]  %s991, 256, %s14, [#allocation4], 128, 128, 8
    $region69: #{tpu_custom_call.1} parent=1 // pred_fallthru
      _
    // Predicated region
    $region70: #{tpu_custom_call.1} parent=1 // pred_check
      _
    $region71: #{tpu_custom_call.1} parent=1 // pred_check_branch
      %998 = sbr.rel (0) target = $region73
    $region72: #{tpu_custom_call.1} parent=1 // pred_region
      %999 = dma.done [#allocation4], 256
    $region73: #{tpu_custom_call.1} parent=1 // pred_fallthru
      _
    %1000 = vsyncpa [#allocation3], 1
    %1001 = vsyncpa [#allocation6], 1
    %1002 = vsyncpa [#allocation4], 1

</llo_original>
